<compile_context>
chip_gen: v5e
topology: v5e:2x2
jax: 0.10.0
libtpu: 0.0.40
codegen_flags: <defaults>
</compile_context>

<pallas_src>
import functools

import jax
import jax.numpy as jnp
from jax.experimental import pallas as pl
from jax.experimental.pallas import tpu as pltpu

_LANE = 128            # pad head outputs to a full lane width
_MAX_BATCH_TILE = 512  # amortizes ~0.35us/grid-step overhead; tiny vs VMEM


def _round_up(n, m):
    return ((n + m - 1) // m) * m


def _policy_kernel(x_ref, w1_ref, w2_ref, w3_ref, b_ref, action_ref, landing_ref):
    # Layer 1: bias folded into w1's extra row (x carries a ones column).
    h = jnp.dot(x_ref[...], w1_ref[...], preferred_element_type=jnp.float32)
    h = jnp.maximum(h, 0.0)
    # Layer 2 (action head); output padded to 128 lanes (pad weight/bias cols = 0).
    a = jnp.dot(h, w2_ref[...], preferred_element_type=jnp.float32) + b_ref[0:1, :]
    action_ref[...] = a.astype(action_ref.dtype)
    # Layer 3 (landing head) from relu(action_out); pad lanes stay exactly 0.
    a_relu = jnp.maximum(a, 0.0)
    l = jnp.dot(a_relu, w3_ref[...], preferred_element_type=jnp.float32) + b_ref[1:2, :]
    landing_ref[...] = l.astype(landing_ref.dtype)


def init_params(key, state_dim=7, hidden_dim=32, action_dim=9, landing_dim=3):
    """Deterministic synthetic parameters (PyTorch nn.Linear shape convention)."""
    ks = jax.random.split(key, 6)

    def linear(kw, kb, out_d, in_d):
        bound = 1.0 / jnp.sqrt(in_d)
        w = jax.random.uniform(kw, (out_d, in_d), jnp.float32, -bound, bound)
        b = jax.random.uniform(kb, (out_d,), jnp.float32, -bound, bound)
        return w, b

    return {
        "hidden": linear(ks[0], ks[1], hidden_dim, state_dim),
        "action": linear(ks[2], ks[3], action_dim, hidden_dim),
        "landing": linear(ks[4], ks[5], landing_dim, action_dim),
    }


def prepare_params(params):
    """One-time repack of PyTorch-convention params into kernel layout.

    Done at init so no transposes / reshapes sit on the per-call path."""
    w1, b1 = params["hidden"]
    w2, b2 = params["action"]
    w3, b3 = params["landing"]
    hidden_dim, state_dim = w1.shape
    action_dim = w2.shape[0]
    landing_dim = w3.shape[0]

    # +1 ones column carries the folded layer-1 bias; round up to 8 sublanes.
    sp = _round_up(state_dim + 1, 8)
    w1_aug = jnp.zeros((sp, hidden_dim), jnp.float32)
    w1_aug = w1_aug.at[:state_dim, :].set(w1.T)
    w1_aug = w1_aug.at[state_dim, :].set(b1)

    # Heads: [in, out] layout, output dim zero-padded to 128 lanes. w3's
    # contraction dim is padded to 128 so it consumes the padded action
    # activations directly (pad rows are zero -> numerically exact).
    w2t = jnp.zeros((hidden_dim, _LANE), jnp.float32).at[:, :action_dim].set(w2.T)
    w3t = jnp.zeros((_LANE, _LANE), jnp.float32).at[:action_dim, :landing_dim].set(w3.T)

    # Layer-2/3 biases packed into one sublane-aligned buffer (1 DMA, not 2).
    b_pack = jnp.zeros((8, _LANE), jnp.float32)
    b_pack = b_pack.at[0, :action_dim].set(b2)
    b_pack = b_pack.at[1, :landing_dim].set(b3)

    return {
        "w1_aug": w1_aug, "w2t": w2t, "w3t": w3t, "b_pack": b_pack,
        "state_dim": state_dim, "action_dim": action_dim, "landing_dim": landing_dim,
    }


@functools.partial(jax.jit, static_argnames=("state_dim", "action_dim", "landing_dim"))
def _forward_impl(x, w1_aug, w2t, w3t, b_pack, *, state_dim, action_dim, landing_dim):
    B = x.shape[0]
    sp, hidden_dim = w1_aug.shape
    lane = w2t.shape[1]

    # Batch tile: big enough to amortize per-grid-step overhead, small enough
    # that padded [tb, 128] fp32 blocks are trivial vs VMEM (incl. v7x 64 MiB).
    tb = min(_round_up(B, 8), _MAX_BATCH_TILE)
    b_pad = _round_up(B, tb)

    # Pad batch + state (7 -> 8) and plant the ones column that carries b1.
    # (Fused under jit -- no standalone per-call transpose/reshape dispatches.)
    x_aug = jnp.zeros((b_pad, sp), jnp.float32)
    x_aug = x_aug.at[:B, :state_dim].set(x.astype(jnp.float32))
    x_aug = x_aug.at[:B, state_dim].set(1.0)

    grid = (b_pad // tb,)
    action_pad, landing_pad = pl.pallas_call(
        _policy_kernel,
        out_shape=(
            jax.ShapeDtypeStruct((b_pad, lane), jnp.float32),
            jax.ShapeDtypeStruct((b_pad, lane), jnp.float32),
        ),
        grid=grid,
        in_specs=[
            pl.BlockSpec((tb, sp), lambda i: (i, 0)),            # x: tiled over batch
            pl.BlockSpec((sp, hidden_dim), lambda i: (0, 0)),    # weights: VMEM-resident
            pl.BlockSpec((hidden_dim, lane), lambda i: (0, 0)),
            pl.BlockSpec((lane, lane), lambda i: (0, 0)),
            pl.BlockSpec((8, lane), lambda i: (0, 0)),           # packed biases
        ],
        out_specs=(
            pl.BlockSpec((tb, lane), lambda i: (i, 0)),
            pl.BlockSpec((tb, lane), lambda i: (i, 0)),
        ),
        compiler_params=pltpu.CompilerParams(
            dimension_semantics=("parallel",)),
    )(x_aug, w1_aug, w2t, w3t, b_pack)

    # Kernel outputs are lane-dense [b_pad, 128]; slice off the exact-zero pad.
    return action_pad[:B, :action_dim], landing_pad[:B, :landing_dim]


def policy_net_forward(x, prep):
    """x: [B, state_dim] float32; prep: output of prepare_params()."""
    return _forward_impl(
        x, prep["w1_aug"], prep["w2t"], prep["w3t"], prep["b_pack"],
        state_dim=prep["state_dim"], action_dim=prep["action_dim"],
        landing_dim=prep["landing_dim"])


def _reference_forward(x, params):
    w1, b1 = params["hidden"]
    w2, b2 = params["action"]
    w3, b3 = params["landing"]
    h = x @ w1.T + b1
    a = jnp.maximum(h, 0.0) @ w2.T + b2
    l = jnp.maximum(a, 0.0) @ w3.T + b3
    return a, l


if __name__ == "__main__":
    key = jax.random.PRNGKey(0)
    k_param, k_x = jax.random.split(key)

    batch = 8
    state_dim, hidden_dim, action_dim, landing_dim = 7, 32, 9, 3

    params = init_params(k_param, state_dim, hidden_dim, action_dim, landing_dim)
    prep = prepare_params(params)  # one-time layout prep (off the hot path)
    x = jax.random.normal(k_x, (batch, state_dim), jnp.float32)

    action_out, landing_out = policy_net_forward(x, prep)
    jax.block_until_ready((action_out, landing_out))

    # Sanity check against pure-JAX reference.
    a_ref, l_ref = _reference_forward(x, params)
    assert action_out.shape == (batch, action_dim)
    assert landing_out.shape == (batch, landing_dim)
    assert jnp.allclose(action_out, a_ref, atol=1e-5, rtol=1e-5)
    assert jnp.allclose(landing_out, l_ref, atol=1e-5, rtol=1e-5)

    print("KERNEL_OK")
</pallas_src>

<mosaic_0001>
module attributes {stable_mosaic.version = 11 : i64} {
  func.func @_policy_kernel(%arg0: i32, %arg1: memref<8x8xf32, #tpu.memory_space<vmem>>, %arg2: memref<8x32xf32, #tpu.memory_space<vmem>>, %arg3: memref<32x128xf32, #tpu.memory_space<vmem>>, %arg4: memref<128x128xf32, #tpu.memory_space<vmem>>, %arg5: memref<8x128xf32, #tpu.memory_space<vmem>>, %arg6: memref<8x128xf32, #tpu.memory_space<vmem>>, %arg7: memref<8x128xf32, #tpu.memory_space<vmem>>) attributes {dimension_semantics = [#tpu.dimension_semantics<parallel>], iteration_bounds = array<i64: 1>, scalar_prefetch = 0 : i64, scratch_operands = 0 : i64, tpu.core_type = #tpu.core_type<tc>, window_params = [{transform_indices = @transform_0, window_bounds = array<i64: 8, 8>}, {pipeline_mode = #tpu.pipeline_mode<synchronous>, transform_indices = @transform_1, window_bounds = array<i64: 8, 32>}, {pipeline_mode = #tpu.pipeline_mode<synchronous>, transform_indices = @transform_2, window_bounds = array<i64: 32, 128>}, {pipeline_mode = #tpu.pipeline_mode<synchronous>, transform_indices = @transform_3, window_bounds = array<i64: 128, 128>}, {pipeline_mode = #tpu.pipeline_mode<synchronous>, transform_indices = @transform_4, window_bounds = array<i64: 8, 128>}, {transform_indices = @transform_5, window_bounds = array<i64: 8, 128>}, {transform_indices = @transform_6, window_bounds = array<i64: 8, 128>}]} {
    %c0 = arith.constant 0 : index
    %c0_0 = arith.constant 0 : index
    %0 = vector.load %arg1[%c0, %c0_0] : memref<8x8xf32, #tpu.memory_space<vmem>>, vector<8x8xf32>
    %c0_1 = arith.constant 0 : index
    %c0_2 = arith.constant 0 : index
    %1 = vector.load %arg2[%c0_1, %c0_2] : memref<8x32xf32, #tpu.memory_space<vmem>>, vector<8x32xf32>
    %cst = arith.constant dense<0.000000e+00> : vector<8x32xf32>
    %2 = tpu.matmul %0, %1, %cst {dimension_numbers = #tpu.dot_dimension_numbers<[1], [0], [0], [1], [0, 0, 1, 1], [], []>} : vector<8x8xf32>, vector<8x32xf32>, vector<8x32xf32> -> vector<8x32xf32>
    %cst_3 = arith.constant 0.000000e+00 : f32
    %3 = vector.broadcast %cst_3 : f32 to vector<8x32xf32>
    %4 = arith.maximumf %2, %3 : vector<8x32xf32>
    %c0_4 = arith.constant 0 : index
    %c0_5 = arith.constant 0 : index
    %5 = vector.load %arg3[%c0_4, %c0_5] : memref<32x128xf32, #tpu.memory_space<vmem>>, vector<32x128xf32>
    %cst_6 = arith.constant dense<0.000000e+00> : vector<8x128xf32>
    %6 = tpu.matmul %4, %5, %cst_6 {dimension_numbers = #tpu.dot_dimension_numbers<[1], [0], [0], [1], [0, 0, 1, 1], [], []>} : vector<8x32xf32>, vector<32x128xf32>, vector<8x128xf32> -> vector<8x128xf32>
    %c0_7 = arith.constant 0 : index
    %c0_8 = arith.constant 0 : index
    %7 = vector.load %arg5[%c0_7, %c0_8] : memref<8x128xf32, #tpu.memory_space<vmem>>, vector<1x128xf32>
    %8 = vector.broadcast %7 : vector<1x128xf32> to vector<8x128xf32>
    %9 = arith.addf %6, %8 : vector<8x128xf32>
    %c0_9 = arith.constant 0 : index
    %c0_10 = arith.constant 0 : index
    %10 = vector.load %arg6[%c0_9, %c0_10] : memref<8x128xf32, #tpu.memory_space<vmem>>, vector<8x128xf32>
    tpu.vector_store %arg6[%c0_9, %c0_10], %9 {strides = array<i32>} : memref<8x128xf32, #tpu.memory_space<vmem>>, vector<8x128xf32>,
    %cst_11 = arith.constant 0.000000e+00 : f32
    %11 = vector.broadcast %cst_11 : f32 to vector<8x128xf32>
    %12 = arith.maximumf %9, %11 : vector<8x128xf32>
    %c0_12 = arith.constant 0 : index
    %c0_13 = arith.constant 0 : index
    %13 = vector.load %arg4[%c0_12, %c0_13] : memref<128x128xf32, #tpu.memory_space<vmem>>, vector<128x128xf32>
    %cst_14 = arith.constant dense<0.000000e+00> : vector<8x128xf32>
    %14 = tpu.matmul %12, %13, %cst_14 {dimension_numbers = #tpu.dot_dimension_numbers<[1], [0], [0], [1], [0, 0, 1, 1], [], []>} : vector<8x128xf32>, vector<128x128xf32>, vector<8x128xf32> -> vector<8x128xf32>
    %c1 = arith.constant 1 : index
    %c0_15 = arith.constant 0 : index
    %15 = vector.load %arg5[%c1, %c0_15] : memref<8x128xf32, #tpu.memory_space<vmem>>, vector<1x128xf32>
    %16 = vector.broadcast %15 : vector<1x128xf32> to vector<8x128xf32>
    %17 = arith.addf %14, %16 : vector<8x128xf32>
    %c0_16 = arith.constant 0 : index
    %c0_17 = arith.constant 0 : index
    %18 = vector.load %arg7[%c0_16, %c0_17] : memref<8x128xf32, #tpu.memory_space<vmem>>, vector<8x128xf32>
    tpu.vector_store %arg7[%c0_16, %c0_17], %17 {strides = array<i32>} : memref<8x128xf32, #tpu.memory_space<vmem>>, vector<8x128xf32>,
    return
  }
  func.func @transform_0(%arg0: i32) -> (i32, i32) {
    %c0_i32 = arith.constant 0 : i32
    %c0_i32_0 = arith.constant 0 : i32
    return %arg0, %c0_i32 : i32, i32
  }
  func.func @transform_1(%arg0: i32) -> (i32, i32) {
    %c0_i32 = arith.constant 0 : i32
    %c0_i32_0 = arith.constant 0 : i32
    %c0_i32_1 = arith.constant 0 : i32
    return %c0_i32, %c0_i32_0 : i32, i32
  }
  func.func @transform_2(%arg0: i32) -> (i32, i32) {
    %c0_i32 = arith.constant 0 : i32
    %c0_i32_0 = arith.constant 0 : i32
    %c0_i32_1 = arith.constant 0 : i32
    return %c0_i32, %c0_i32_0 : i32, i32
  }
  func.func @transform_3(%arg0: i32) -> (i32, i32) {
    %c0_i32 = arith.constant 0 : i32
    %c0_i32_0 = arith.constant 0 : i32
    %c0_i32_1 = arith.constant 0 : i32
    return %c0_i32, %c0_i32_0 : i32, i32
  }
  func.func @transform_4(%arg0: i32) -> (i32, i32) {
    %c0_i32 = arith.constant 0 : i32
    %c0_i32_0 = arith.constant 0 : i32
    %c0_i32_1 = arith.constant 0 : i32
    return %c0_i32, %c0_i32_0 : i32, i32
  }
  func.func @transform_5(%arg0: i32) -> (i32, i32) {
    %c0_i32 = arith.constant 0 : i32
    %c0_i32_0 = arith.constant 0 : i32
    return %arg0, %c0_i32 : i32, i32
  }
  func.func @transform_6(%arg0: i32) -> (i32, i32) {
    %c0_i32 = arith.constant 0 : i32
    %c0_i32_0 = arith.constant 0 : i32
    return %arg0, %c0_i32 : i32, i32
  }
}

</mosaic_0001>

<llo_original>
// kernel: _forward_impl.1
$region0: #{_forward_impl.1}
  #allocation0 [shape = 'u32[]', space=smem, size = 0x4, offset = 0x4, fixed_abs, tag = 'smem constant byte address 0x4 - core index']
  #allocation1 [shape = 'u32[72,128]{1,0:T(1,128)}', space=vmem, size = 0x9000, scoped, tag = 'internal scratch']
  %s0 = inlined_call_operand.vmem [shape: f32[8,8], index: 0, kind: input, shape index: {}]
  %s1 = inlined_call_operand.vmem [shape: f32[8,32], index: 1, kind: input, shape index: {}]
  %s2 = inlined_call_operand.vmem [shape: f32[32,128], index: 2, kind: input, shape index: {}]
  %s3 = inlined_call_operand.hbm [shape: f32[128,128], index: 3, kind: input, shape index: {}]
  %s4 = inlined_call_operand.hbm [shape: f32[8,128], index: 4, kind: input, shape index: {}]
  %s5 = inlined_call_operand.hbm [shape: f32[8,128], index: 5, kind: output, shape index: {0}]
  %s6 = inlined_call_operand.vmem [shape: f32[8,128], index: 6, kind: output, shape index: {1}]
  %7 = xla_tuple %s5, %s6
  %s8 = sld [smem:[#allocation0]]
  $region46: #{_forward_impl.1} parent=0
    _
  %s10 = ssub.s32 1, %s8
  %s11 = scalar_select 0, %s10, %s8
  $region1: #{_forward_impl.1} parent=0
    #allocation2 [shape = 'u8[65536]{0}', space=vmem, size = 0x10000, scoped, tag = 'input window, operand 3, single buffered']
    #allocation3 [shape = 's32[1]{0}', space=sflag, size = 0x4, scoped, tag = 'scoped memory for _forward_impl.1']
    #allocation4 [shape = 's32[1]{0}', space=sflag, size = 0x4, scoped, tag = 'scoped memory for _forward_impl.1']
    #allocation5 [shape = 'u8[4096]{0}', space=vmem, size = 0x1000, scoped, tag = 'input window, operand 4, single buffered']
    #allocation6 [shape = 's32[1]{0}', space=sflag, size = 0x4, scoped, tag = 'scoped memory for _forward_impl.1']
    #allocation7 [shape = 'u8[4096]{0}', space=vmem, size = 0x1000, scoped, tag = 'output window, operand 0, single buffered']
    %12 = vsyncpa [#allocation3], 0
    %13 = vsyncpa [#allocation6], 0
    %14 = vsyncpa [#allocation4], 0
    // Predicated region
    $region2: #{_forward_impl.1} parent=1 // pred_check
      _
    $region3: #{_forward_impl.1} parent=1 // pred_check_branch
      %16 = sbr.rel (0) target = $region5
    $region4: #{_forward_impl.1} parent=1 // pred_region
      _
    $region5: #{_forward_impl.1} parent=1 // pred_fallthru
      _
    // Predicated region
    $region6: #{_forward_impl.1} parent=1 // pred_check
      _
    $region7: #{_forward_impl.1} parent=1 // pred_check_branch
      %18 = sbr.rel (0) target = $region9
    $region8: #{_forward_impl.1} parent=1 // pred_region
      _
    $region9: #{_forward_impl.1} parent=1 // pred_fallthru
      _
    // Predicated region
    $region10: #{_forward_impl.1} parent=1 // pred_check
      _
    $region11: #{_forward_impl.1} parent=1 // pred_check_branch
      %20 = sbr.rel (0) target = $region13
    $region12: #{_forward_impl.1} parent=1 // pred_region
      _
    $region13: #{_forward_impl.1} parent=1 // pred_fallthru
      _
    // Predicated region
    $region14: #{_forward_impl.1} parent=1 // pred_check
      _
    $region15: #{_forward_impl.1} parent=1 // pred_check_branch
      %22 = sbr.rel (0) target = $region17
    $region16: #{_forward_impl.1} parent=1 // pred_region
      %24 = vsyncadd [#allocation3], 0
      %s25 = sshll.u32 %s3, 4
      %s26 = int_to_ptr.hbm [resolvable:$true] %s25
      %s27 = sshll.u32 [#allocation2], 4
      %s28 = int_to_ptr.vmem [resolvable:$true] %s27
      %33 = dma.hbm_to_vmem [thread:$0]  %s26, 2048, %s28, [#allocation3], 128, 128, 8
    $region17: #{_forward_impl.1} parent=1 // pred_fallthru
      _
    // Predicated region
    $region18: #{_forward_impl.1} parent=1 // pred_check
      _
    $region19: #{_forward_impl.1} parent=1 // pred_check_branch
      %35 = sbr.rel (0) target = $region21
    $region20: #{_forward_impl.1} parent=1 // pred_region
      %37 = vsyncadd [#allocation6], 0
      %s39 = sshll.u32 %s4, 4
      %s40 = int_to_ptr.hbm [resolvable:$true] %s39
      %s41 = sshll.u32 [#allocation5], 4
      %s42 = int_to_ptr.vmem [resolvable:$true] %s41
      %44 = dma.hbm_to_vmem [thread:$0]  %s40, 128, %s42, [#allocation6]
    $region21: #{_forward_impl.1} parent=1 // pred_fallthru
      _
    // Predicated region
    $region22: #{_forward_impl.1} parent=1 // pred_check
      _
    $region23: #{_forward_impl.1} parent=1 // pred_check_branch
      %46 = sbr.rel (0) target = $region25
    $region24: #{_forward_impl.1} parent=1 // pred_region
      %48 = dma.done [#allocation3], 2048
    $region25: #{_forward_impl.1} parent=1 // pred_fallthru
      _
    // Predicated region
    $region26: #{_forward_impl.1} parent=1 // pred_check
      _
    $region27: #{_forward_impl.1} parent=1 // pred_check_branch
      %50 = sbr.rel (0) target = $region29
    $region28: #{_forward_impl.1} parent=1 // pred_region
      %52 = dma.done [#allocation6], 128
    $region29: #{_forward_impl.1} parent=1 // pred_fallthru
      _
    %v53 = vld [vmem:[%s0] sm:$0xff]
    %v54 = vld [vmem:[%s1] sm:$0xff]
    %vm55 = vcmask 64512
    %v57 = vsel %vm55, %v53, 0
    %59 = vmatpush.msra.mxu0 0.0
    %60 = vmatpush.msra.mxu0 0.0
    %61 = vmatpush.msra.mxu0 0.0
    %62 = vmatpush.msra.mxu0 0.0
    %63 = vmatpush.msra.mxu0 0.0
    %64 = vmatpush.msra.mxu0 0.0
    %65 = vmatpush.msra.mxu0 0.0
    %66 = vmatpush.msra.mxu0 0.0
    %67 = vmatpush.msra.mxu0 0.0
    %68 = vmatpush.msra.mxu0 0.0
    %69 = vmatpush.msra.mxu0 0.0
    %70 = vmatpush.msra.mxu0 0.0
    %71 = vmatpush.msra.mxu0 0.0
    %72 = vmatpush.msra.mxu0 0.0
    %73 = vmatpush.msra.mxu0 0.0
    %74 = vmatpush.msra.mxu0 %v54
    %75 = vmatmul.f32.gmra.mxu0 %v57
    %v76 = vpop.f32.mrf.mxu0
    %v77 = vadd.f32 0.0, %v76
    %78 = vdwg.mxu0
    %v79 = vmax.f32 %v77, 0.0
    %v80 = vld [vmem:[%s2] sm:$0xff]
    %v81 = vld [vmem:[%s2 + $0x8] sm:$0xff]
    %v82 = vld [vmem:[%s2 + $0x10] sm:$0xff]
    %v83 = vld [vmem:[%s2 + $0x18] sm:$0xff]
    %v84 = vld [vmem:[#allocation5] sm:$0x1]
    %v85 = vperm.slane %v84, 0
    %vm86 = vcmask 261120
    %v88 = vsel %vm86, %v79, 0
    %90 = vmatpush.msra.mxu0 0.0
    %91 = vmatpush.msra.mxu0 0.0
    %92 = vmatpush.msra.mxu0 0.0
    %93 = vmatpush.msra.mxu0 0.0
    %94 = vmatpush.msra.mxu0 0.0
    %95 = vmatpush.msra.mxu0 0.0
    %96 = vmatpush.msra.mxu0 0.0
    %97 = vmatpush.msra.mxu0 0.0
    %98 = vmatpush.msra.mxu0 0.0
    %99 = vmatpush.msra.mxu0 0.0
    %100 = vmatpush.msra.mxu0 0.0
    %101 = vmatpush.msra.mxu0 0.0
    %102 = vmatpush.msra.mxu0 %v83
    %103 = vmatpush.msra.mxu0 %v82
    %104 = vmatpush.msra.mxu0 %v81
    %105 = vmatpush.msra.mxu0 %v80
    %106 = vmatmul.f32.gmra.mxu0 %v88
    %v107 = vpop.f32.mrf.mxu0
    %v108 = vadd.f32 %v85, %v107
    %109 = vdwg.mxu0
    %110 = vst [vmem:[#allocation7] sm:$0xff] %v108
    %v111 = vmax.f32 %v108, 0.0
    %v112 = vld [vmem:[#allocation2] sm:$0xff]
    %v113 = vld [vmem:[#allocation2 + $0x8] sm:$0xff]
    %v114 = vld [vmem:[#allocation2 + $0x10] sm:$0xff]
    %v115 = vld [vmem:[#allocation2 + $0x18] sm:$0xff]
    %v116 = vld [vmem:[#allocation2 + $0x20] sm:$0xff]
    %v117 = vld [vmem:[#allocation2 + $0x28] sm:$0xff]
    %v118 = vld [vmem:[#allocation2 + $0x30] sm:$0xff]
    %v119 = vld [vmem:[#allocation2 + $0x38] sm:$0xff]
    %v120 = vld [vmem:[#allocation2 + $0x40] sm:$0xff]
    %v121 = vld [vmem:[#allocation2 + $0x48] sm:$0xff]
    %v122 = vld [vmem:[#allocation2 + $0x50] sm:$0xff]
    %v123 = vld [vmem:[#allocation2 + $0x58] sm:$0xff]
    %v124 = vld [vmem:[#allocation2 + $0x60] sm:$0xff]
    %v125 = vld [vmem:[#allocation2 + $0x68] sm:$0xff]
    %v126 = vld [vmem:[#allocation2 + $0x70] sm:$0xff]
    %v127 = vld [vmem:[#allocation2 + $0x78] sm:$0xff]
    %v128 = vld [vmem:[#allocation5 + $0x1] sm:$0x1]
    %v129 = vperm.slane %v128, 0
    %130 = vmatpush.msra.mxu0 %v127
    %131 = vmatpush.msra.mxu0 %v126
    %132 = vmatpush.msra.mxu0 %v125
    %133 = vmatpush.msra.mxu0 %v124
    %134 = vmatpush.msra.mxu0 %v123
    %135 = vmatpush.msra.mxu0 %v122
    %136 = vmatpush.msra.mxu0 %v121
    %137 = vmatpush.msra.mxu0 %v120
    %138 = vmatpush.msra.mxu0 %v119
    %139 = vmatpush.msra.mxu0 %v118
    %140 = vmatpush.msra.mxu0 %v117
    %141 = vmatpush.msra.mxu0 %v116
    %142 = vmatpush.msra.mxu0 %v115
    %143 = vmatpush.msra.mxu0 %v114
    %144 = vmatpush.msra.mxu0 %v113
    %145 = vmatpush.msra.mxu0 %v112
    %146 = vmatmul.f32.gmra.mxu0 %v111
    %v147 = vpop.f32.mrf.mxu0
    %v148 = vadd.f32 %v129, %v147
    %149 = vdwg.mxu0
    %150 = vst [vmem:[%s6] sm:$0xff] %v148
    // Predicated region
    $region30: #{_forward_impl.1} parent=1 // pred_check
      _
    $region31: #{_forward_impl.1} parent=1 // pred_check_branch
      %152 = sbr.rel (0) target = $region33
    $region32: #{_forward_impl.1} parent=1 // pred_region
      %154 = vsyncadd [#allocation4], 0
      %s156 = sshll.u32 [#allocation7], 4
      %s157 = int_to_ptr.vmem [resolvable:$true] %s156
      %s158 = sshll.u32 %s5, 4
      %s159 = int_to_ptr.hbm [resolvable:$true] %s158
      %161 = dma.vmem_to_hbm [thread:$0]  %s157, 128, %s159, [#allocation4]
    $region33: #{_forward_impl.1} parent=1 // pred_fallthru
      _
    // Predicated region
    $region34: #{_forward_impl.1} parent=1 // pred_check
      _
    $region35: #{_forward_impl.1} parent=1 // pred_check_branch
      %163 = sbr.rel (0) target = $region37
    $region36: #{_forward_impl.1} parent=1 // pred_region
      _
    $region37: #{_forward_impl.1} parent=1 // pred_fallthru
      _
    // Predicated region
    $region38: #{_forward_impl.1} parent=1 // pred_check
      _
    $region39: #{_forward_impl.1} parent=1 // pred_check_branch
      %165 = sbr.rel (0) target = $region41
    $region40: #{_forward_impl.1} parent=1 // pred_region
      %167 = dma.done [#allocation4], 128
    $region41: #{_forward_impl.1} parent=1 // pred_fallthru
      _
    // Predicated region
    $region42: #{_forward_impl.1} parent=1 // pred_check
      _
    $region43: #{_forward_impl.1} parent=1 // pred_check_branch
      %169 = sbr.rel (0) target = $region45
    $region44: #{_forward_impl.1} parent=1 // pred_region
      _
    $region45: #{_forward_impl.1} parent=1 // pred_fallthru
      _
    %170 = vsyncpa [#allocation3], 1
    %171 = vsyncpa [#allocation6], 1
    %172 = vsyncpa [#allocation4], 1

</llo_original>
